<compile_context>
chip_gen: v7x
topology: tpu7x:2x2x1
jax: 0.10.0
libtpu: 0.0.40
codegen_flags: <defaults>
</compile_context>

<pallas_src>
import functools

import jax
import jax.numpy as jnp
from jax import lax
from jax.experimental import pallas as pl
from jax.experimental.pallas import tpu as pltpu

N_SYMBOLS  = 96     # 95 printable ascii + '~'  (matches symbol_to_id)
MEL_DIM    = 80     # mel channels (asr default in _run_decoder is (1, 80, T))
HOP        = 128    # synthetic vocoder samples per frame (lane-dense output)
LANE       = 128    # padded lane width (80 -> 128, 96 -> 128)
SEGMENT    = 8      # interface parity; diffusion is fused over time
MAX_TILE_T = 1024   # time tile for long texts
MIN_SPLIT  = 64     # above this, use >=2 tiles so both v7x TCs get work


def _round_up(x, m):
    return ((x + m - 1) // m) * m


def _bucket(length):
    """Pick (padded_rows, time_tile) — coarse buckets to limit recompiles."""
    l8 = max(8, _round_up(length, 8))
    if l8 < MIN_SPLIT:
        return l8, l8                              # single tile, grid=(1,)
    if l8 <= 2 * MAX_TILE_T:
        tile = _round_up(l8 // 2, 8)               # grid=(2,): both v7x TCs
        return 2 * tile, tile
    return _round_up(l8, MAX_TILE_T), MAX_TILE_T   # long text: 1024-row tiles


# --------------------------- fused TTS kernel --------------------------------
def _tts_fused_kernel(ids_ref, feat_ref, noise_ref, spk_ref,
                      w_embed_ref, w_feat_ref, diff_w_ref, diff_b_ref,
                      voc_w_ref, wav_ref):
    t = ids_ref.shape[0]                           # time-tile rows (static)

    # ------------------------------ decoder ---------------------------------
    # One-hot built on-chip directly in bf16: no (L, V) operand touches HBM.
    onehot = (ids_ref[...] ==
              lax.broadcasted_iota(jnp.int32, (t, LANE), 1)).astype(jnp.bfloat16)
    # Two accumulated K=128 MXU passes (embed path + asr/f0/N feature path).
    proj = jnp.dot(onehot, w_embed_ref[...], preferred_element_type=jnp.float32)
    proj = proj + jnp.dot(feat_ref[...], w_feat_ref[...],
                          preferred_element_type=jnp.float32)
    mel = jnp.tanh(proj + spk_ref[...])            # coarse mel, f32 (t, 128)

    # ------------------ diffusion (single denoise step) ---------------------
    # noise ~ N(0,1) streamed in as bf16 (randn_like on the mel features).
    z = (mel + noise_ref[...].astype(jnp.float32)).astype(jnp.bfloat16)
    h = jnp.dot(z, diff_w_ref[...],
                preferred_element_type=jnp.float32) + diff_b_ref[...]
    mel_fine = mel + 0.1 * jnp.tanh(h)

    # ------------------------------ vocoder ---------------------------------
    # HOP == 128 samples per frame -> every output lane useful, unmasked vst.
    wav_ref[...] = jnp.tanh(jnp.dot(mel_fine.astype(jnp.bfloat16),
                                    voc_w_ref[...],
                                    preferred_element_type=jnp.float32))


# ------------------------------ host wrapper ---------------------------------
@functools.partial(jax.jit, static_argnames=("sid",))
def styletts2_forward(params, token_ids, f0, n_aux, asr_t, rng, sid=0):
    """Fused decoder -> diffusion -> vocoder.
    token_ids: (L,) int32; f0/n_aux: (L,) f32; asr_t: (L, 80) f32 time-major;
    rng: PRNG key for the diffusion noise; sid: speaker id."""
    L = int(token_ids.shape[0])
    L_pad, tile_t = _bucket(L)
    grid = (L_pad // tile_t,)

    ids = jnp.pad(token_ids.astype(jnp.int32), (0, L_pad - L)).reshape(L_pad, 1)
    # asr in lanes 0..79, f0 in lane 80, N in lane 81 — rides the same MXU pass.
    feat = jnp.concatenate([asr_t, f0[:, None], n_aux[:, None]], axis=1)
    feat = jnp.pad(feat, ((0, L_pad - L), (0, LANE - feat.shape[1])))
    feat = feat.astype(jnp.bfloat16)
    noise = jax.random.normal(rng, (L_pad, LANE), dtype=jnp.bfloat16)
    spk = params["spk_embed"][sid][None, :]                       # (1, 128) f32

    cost = pl.CostEstimate(
        flops=2 * L_pad * LANE * (4 * LANE),                       # 4 K=128 dots
        transcendentals=3 * L_pad * LANE,
        bytes_accessed=(L_pad * (4 + 2 * 2 * LANE)                 # ids+feat+noise
                        + 4 * LANE * LANE * 2 + 2 * LANE * 4 * 2   # weights/bias/spk
                        + L_pad * LANE * 4))                       # wav out

    in_specs = [
        pl.BlockSpec((tile_t, 1),    lambda i: (i, 0)),            # ids
        pl.BlockSpec((tile_t, LANE), lambda i: (i, 0)),            # feat (bf16)
        pl.BlockSpec((tile_t, LANE), lambda i: (i, 0)),            # noise (bf16)
        pl.BlockSpec((1, LANE),      lambda i: (0, 0)),            # spk
        pl.BlockSpec((LANE, LANE),   lambda i: (0, 0)),            # w_embed
        pl.BlockSpec((LANE, LANE),   lambda i: (0, 0)),            # w_feat
        pl.BlockSpec((LANE, LANE),   lambda i: (0, 0)),            # diff_w
        pl.BlockSpec((1, LANE),      lambda i: (0, 0)),            # diff_b
        pl.BlockSpec((LANE, LANE),   lambda i: (0, 0)),            # voc_w
    ]
    out_spec = pl.BlockSpec((tile_t, LANE), lambda i: (i, 0))

    wav_frames = pl.pallas_call(
        _tts_fused_kernel,
        out_shape=jax.ShapeDtypeStruct((L_pad, LANE), jnp.float32),
        grid=grid,
        in_specs=in_specs,
        out_specs=out_spec,
        compiler_params=pltpu.CompilerParams(
            dimension_semantics=("parallel",)),
        cost_estimate=cost,
    )(ids, feat, noise, spk,
      params["w_embed"], params["w_feat"], params["diff_w"],
      params["diff_b"], params["voc_w"])

    # Drop row padding; all 128 lanes of every row are real samples.
    return wav_frames[:L].reshape(1, L * HOP)


# ------------------------------- parameters ----------------------------------
def init_params(key):
    ks = jax.random.split(key, 6)

    def blockw(k, rows, cols, rpad=LANE, cpad=LANE, scale=0.1):
        w = jax.random.normal(k, (rows, cols), jnp.float32) * scale
        return jnp.pad(w, ((0, rpad - rows), (0, cpad - cols)))

    embed = blockw(ks[0], N_SYMBOLS, MEL_DIM)                     # (128, 128)
    asr_w = blockw(ks[1], MEL_DIM,   MEL_DIM)                     # (128, 128)
    aux_w = jax.random.normal(ks[2], (2, MEL_DIM), jnp.float32) * 0.1
    # Fold the f0 / N weights into rows 80, 81 of the feature weight so the
    # aux contribution rides the asr matmul for free.
    w_feat = asr_w.at[MEL_DIM:MEL_DIM + 2, :MEL_DIM].set(aux_w)

    return {
        "w_embed":   embed.astype(jnp.bfloat16),
        "w_feat":    w_feat.astype(jnp.bfloat16),
        "spk_embed": blockw(ks[3], 4, MEL_DIM, rpad=4),           # (4, 128) f32
        "diff_w":    blockw(ks[4], MEL_DIM, MEL_DIM).astype(jnp.bfloat16),
        "diff_b":    jnp.zeros((1, LANE), jnp.float32),
        "voc_w":     blockw(ks[5], MEL_DIM, HOP).astype(jnp.bfloat16),
    }


# --------------------------------- wrapper ------------------------------------
class StyleTTS2Wrapper:
    def __init__(self, params, segment=SEGMENT):
        self.params = params
        self.segment = segment   # parity with the PyTorch cfg; fused over time
        syms = [chr(i) for i in range(32, 127)] + ['~']
        self.symbol_to_id = {s: i for i, s in enumerate(syms)}

    def tokenize(self, text):
        ids = [self.symbol_to_id.get(c, self.symbol_to_id['~'])
               for c in text.lower()]
        return jnp.asarray(ids, dtype=jnp.int32)

    def forward(self, text, rng):
        tokens = self.tokenize(text)                               # (L,)
        L = tokens.shape[0]
        # defaults filled in by _run_decoder when no aux feats are set
        # (asr kept time-major at the source to avoid a transpose):
        f0    = jnp.zeros((L,), jnp.float32)
        n_aux = jnp.zeros((L,), jnp.float32)
        asr_t = jnp.zeros((L, MEL_DIM), jnp.float32)
        return styletts2_forward(self.params, tokens, f0, n_aux, asr_t,
                                 rng, sid=0)


if __name__ == "__main__":
    key = jax.random.PRNGKey(0)
    pkey, nkey = jax.random.split(key)
    params = init_params(pkey)
    model = StyleTTS2Wrapper(params, segment=SEGMENT)

    text = "hello, world!"          # 13 tokens -> padded to 16 rows, grid=(1,)
    wav = model.forward(text, nkey)
    jax.block_until_ready(wav)

    assert wav.shape == (1, len(text) * HOP), wav.shape
    assert wav.dtype == jnp.float32
    assert bool(jnp.all(jnp.isfinite(wav)))
    print("KERNEL_OK")
</pallas_src>

<mosaic_0001>
module attributes {stable_mosaic.version = 11 : i64} {
  func.func @_tts_fused_kernel(%arg0: i32, %arg1: memref<16x1xi32, #tpu.memory_space<vmem>>, %arg2: memref<16x128xbf16, #tpu.memory_space<vmem>>, %arg3: memref<16x128xbf16, #tpu.memory_space<vmem>>, %arg4: memref<1x128xf32, #tpu.memory_space<vmem>>, %arg5: memref<128x128xbf16, #tpu.memory_space<vmem>>, %arg6: memref<128x128xbf16, #tpu.memory_space<vmem>>, %arg7: memref<128x128xbf16, #tpu.memory_space<vmem>>, %arg8: memref<1x128xf32, #tpu.memory_space<vmem>>, %arg9: memref<128x128xbf16, #tpu.memory_space<vmem>>, %arg10: memref<16x128xf32, #tpu.memory_space<vmem>>) attributes {dimension_semantics = [#tpu.dimension_semantics<parallel>], iteration_bounds = array<i64: 1>, scalar_prefetch = 0 : i64, scratch_operands = 0 : i64, tpu.core_type = #tpu.core_type<tc>, window_params = [{transform_indices = @transform_0, window_bounds = array<i64: 16, 1>}, {transform_indices = @transform_1, window_bounds = array<i64: 16, 128>}, {transform_indices = @transform_2, window_bounds = array<i64: 16, 128>}, {pipeline_mode = #tpu.pipeline_mode<synchronous>, transform_indices = @transform_3, window_bounds = array<i64: 1, 128>}, {pipeline_mode = #tpu.pipeline_mode<synchronous>, transform_indices = @transform_4, window_bounds = array<i64: 128, 128>}, {pipeline_mode = #tpu.pipeline_mode<synchronous>, transform_indices = @transform_5, window_bounds = array<i64: 128, 128>}, {pipeline_mode = #tpu.pipeline_mode<synchronous>, transform_indices = @transform_6, window_bounds = array<i64: 128, 128>}, {pipeline_mode = #tpu.pipeline_mode<synchronous>, transform_indices = @transform_7, window_bounds = array<i64: 1, 128>}, {pipeline_mode = #tpu.pipeline_mode<synchronous>, transform_indices = @transform_8, window_bounds = array<i64: 128, 128>}, {transform_indices = @transform_9, window_bounds = array<i64: 16, 128>}]} {
    %c0 = arith.constant 0 : index
    %c0_0 = arith.constant 0 : index
    %0 = vector.load %arg1[%c0, %c0_0] : memref<16x1xi32, #tpu.memory_space<vmem>>, vector<16x1xi32>
    %1 = tpu.iota {dimensions = array<i32: 1>} : vector<16x128xi32>
    %2 = vector.broadcast %0 : vector<16x1xi32> to vector<16x128xi32>
    %3 = arith.cmpi eq, %2, %1 : vector<16x128xi32>
    %4 = arith.extui %3 : vector<16x128xi1> to vector<16x128xi32>
    %5 = arith.sitofp %4 : vector<16x128xi32> to vector<16x128xf32>
    %6 = arith.truncf %5 : vector<16x128xf32> to vector<16x128xbf16>
    %c0_1 = arith.constant 0 : index
    %c0_2 = arith.constant 0 : index
    %7 = vector.load %arg5[%c0_1, %c0_2] : memref<128x128xbf16, #tpu.memory_space<vmem>>, vector<128x128xbf16>
    %cst = arith.constant dense<0.000000e+00> : vector<16x128xf32>
    %8 = tpu.matmul %6, %7, %cst {dimension_numbers = #tpu.dot_dimension_numbers<[1], [0], [0], [1], [0, 0, 1, 1], [], []>} : vector<16x128xbf16>, vector<128x128xbf16>, vector<16x128xf32> -> vector<16x128xf32>
    %c0_3 = arith.constant 0 : index
    %c0_4 = arith.constant 0 : index
    %9 = vector.load %arg2[%c0_3, %c0_4] : memref<16x128xbf16, #tpu.memory_space<vmem>>, vector<16x128xbf16>
    %c0_5 = arith.constant 0 : index
    %c0_6 = arith.constant 0 : index
    %10 = vector.load %arg6[%c0_5, %c0_6] : memref<128x128xbf16, #tpu.memory_space<vmem>>, vector<128x128xbf16>
    %cst_7 = arith.constant dense<0.000000e+00> : vector<16x128xf32>
    %11 = tpu.matmul %9, %10, %cst_7 {dimension_numbers = #tpu.dot_dimension_numbers<[1], [0], [0], [1], [0, 0, 1, 1], [], []>} : vector<16x128xbf16>, vector<128x128xbf16>, vector<16x128xf32> -> vector<16x128xf32>
    %12 = arith.addf %8, %11 : vector<16x128xf32>
    %c0_8 = arith.constant 0 : index
    %c0_9 = arith.constant 0 : index
    %13 = vector.load %arg4[%c0_8, %c0_9] : memref<1x128xf32, #tpu.memory_space<vmem>>, vector<1x128xf32>
    %14 = vector.broadcast %13 : vector<1x128xf32> to vector<16x128xf32>
    %15 = arith.addf %12, %14 : vector<16x128xf32>
    %16 = math.tanh %15 : vector<16x128xf32>
    %c0_10 = arith.constant 0 : index
    %c0_11 = arith.constant 0 : index
    %17 = vector.load %arg3[%c0_10, %c0_11] : memref<16x128xbf16, #tpu.memory_space<vmem>>, vector<16x128xbf16>
    %18 = arith.extf %17 : vector<16x128xbf16> to vector<16x128xf32>
    %19 = arith.addf %16, %18 : vector<16x128xf32>
    %20 = arith.truncf %19 : vector<16x128xf32> to vector<16x128xbf16>
    %c0_12 = arith.constant 0 : index
    %c0_13 = arith.constant 0 : index
    %21 = vector.load %arg7[%c0_12, %c0_13] : memref<128x128xbf16, #tpu.memory_space<vmem>>, vector<128x128xbf16>
    %cst_14 = arith.constant dense<0.000000e+00> : vector<16x128xf32>
    %22 = tpu.matmul %20, %21, %cst_14 {dimension_numbers = #tpu.dot_dimension_numbers<[1], [0], [0], [1], [0, 0, 1, 1], [], []>} : vector<16x128xbf16>, vector<128x128xbf16>, vector<16x128xf32> -> vector<16x128xf32>
    %c0_15 = arith.constant 0 : index
    %c0_16 = arith.constant 0 : index
    %23 = vector.load %arg8[%c0_15, %c0_16] : memref<1x128xf32, #tpu.memory_space<vmem>>, vector<1x128xf32>
    %24 = vector.broadcast %23 : vector<1x128xf32> to vector<16x128xf32>
    %25 = arith.addf %22, %24 : vector<16x128xf32>
    %26 = math.tanh %25 : vector<16x128xf32>
    %cst_17 = arith.constant 1.000000e-01 : f32
    %27 = vector.broadcast %cst_17 : f32 to vector<16x128xf32>
    %28 = arith.mulf %27, %26 : vector<16x128xf32>
    %29 = arith.addf %16, %28 : vector<16x128xf32>
    %30 = arith.truncf %29 : vector<16x128xf32> to vector<16x128xbf16>
    %c0_18 = arith.constant 0 : index
    %c0_19 = arith.constant 0 : index
    %31 = vector.load %arg9[%c0_18, %c0_19] : memref<128x128xbf16, #tpu.memory_space<vmem>>, vector<128x128xbf16>
    %cst_20 = arith.constant dense<0.000000e+00> : vector<16x128xf32>
    %32 = tpu.matmul %30, %31, %cst_20 {dimension_numbers = #tpu.dot_dimension_numbers<[1], [0], [0], [1], [0, 0, 1, 1], [], []>} : vector<16x128xbf16>, vector<128x128xbf16>, vector<16x128xf32> -> vector<16x128xf32>
    %33 = math.tanh %32 : vector<16x128xf32>
    %c0_21 = arith.constant 0 : index
    %c0_22 = arith.constant 0 : index
    %34 = vector.load %arg10[%c0_21, %c0_22] : memref<16x128xf32, #tpu.memory_space<vmem>>, vector<16x128xf32>
    tpu.vector_store %arg10[%c0_21, %c0_22], %33 {strides = array<i32>} : memref<16x128xf32, #tpu.memory_space<vmem>>, vector<16x128xf32>,
    return
  }
  func.func @transform_0(%arg0: i32) -> (i32, i32) {
    %c0_i32 = arith.constant 0 : i32
    %c0_i32_0 = arith.constant 0 : i32
    return %arg0, %c0_i32 : i32, i32
  }
  func.func @transform_1(%arg0: i32) -> (i32, i32) {
    %c0_i32 = arith.constant 0 : i32
    %c0_i32_0 = arith.constant 0 : i32
    return %arg0, %c0_i32 : i32, i32
  }
  func.func @transform_2(%arg0: i32) -> (i32, i32) {
    %c0_i32 = arith.constant 0 : i32
    %c0_i32_0 = arith.constant 0 : i32
    return %arg0, %c0_i32 : i32, i32
  }
  func.func @transform_3(%arg0: i32) -> (i32, i32) {
    %c0_i32 = arith.constant 0 : i32
    %c0_i32_0 = arith.constant 0 : i32
    %c0_i32_1 = arith.constant 0 : i32
    return %c0_i32, %c0_i32_0 : i32, i32
  }
  func.func @transform_4(%arg0: i32) -> (i32, i32) {
    %c0_i32 = arith.constant 0 : i32
    %c0_i32_0 = arith.constant 0 : i32
    %c0_i32_1 = arith.constant 0 : i32
    return %c0_i32, %c0_i32_0 : i32, i32
  }
  func.func @transform_5(%arg0: i32) -> (i32, i32) {
    %c0_i32 = arith.constant 0 : i32
    %c0_i32_0 = arith.constant 0 : i32
    %c0_i32_1 = arith.constant 0 : i32
    return %c0_i32, %c0_i32_0 : i32, i32
  }
  func.func @transform_6(%arg0: i32) -> (i32, i32) {
    %c0_i32 = arith.constant 0 : i32
    %c0_i32_0 = arith.constant 0 : i32
    %c0_i32_1 = arith.constant 0 : i32
    return %c0_i32, %c0_i32_0 : i32, i32
  }
  func.func @transform_7(%arg0: i32) -> (i32, i32) {
    %c0_i32 = arith.constant 0 : i32
    %c0_i32_0 = arith.constant 0 : i32
    %c0_i32_1 = arith.constant 0 : i32
    return %c0_i32, %c0_i32_0 : i32, i32
  }
  func.func @transform_8(%arg0: i32) -> (i32, i32) {
    %c0_i32 = arith.constant 0 : i32
    %c0_i32_0 = arith.constant 0 : i32
    %c0_i32_1 = arith.constant 0 : i32
    return %c0_i32, %c0_i32_0 : i32, i32
  }
  func.func @transform_9(%arg0: i32) -> (i32, i32) {
    %c0_i32 = arith.constant 0 : i32
    %c0_i32_0 = arith.constant 0 : i32
    return %arg0, %c0_i32 : i32, i32
  }
}

</mosaic_0001>

<llo_original>
// kernel: styletts2_forward.1
$region0: #{styletts2_forward.1}
  #allocation0 [shape = 'u32[]', space=smem, size = 0x4, offset = 0x4, fixed_abs, tag = 'smem constant byte address 0x4 - core index']
  #allocation1 [shape = 'u32[144,128]{1,0:T(1,128)}', space=vmem, size = 0x12000, scoped, tag = 'internal scratch']
  %s0 = inlined_call_operand.vmem [shape: s32[16,1], index: 0, kind: input, shape index: {}]
  %s1 = inlined_call_operand.vmem [shape: bf16[16,128], index: 1, kind: input, shape index: {}]
  %s2 = inlined_call_operand.vmem [shape: bf16[16,128], index: 2, kind: input, shape index: {}]
  %s3 = inlined_call_operand.vmem [shape: f32[1,128], index: 3, kind: input, shape index: {}]
  %s4 = inlined_call_operand.vmem [shape: bf16[128,128], index: 4, kind: input, shape index: {}]
  %s5 = inlined_call_operand.vmem [shape: bf16[128,128], index: 5, kind: input, shape index: {}]
  %s6 = inlined_call_operand.vmem [shape: bf16[128,128], index: 6, kind: input, shape index: {}]
  %s7 = inlined_call_operand.vmem [shape: f32[1,128], index: 7, kind: input, shape index: {}]
  %s8 = inlined_call_operand.hbm [shape: bf16[128,128], index: 8, kind: input, shape index: {}]
  %s9 = inlined_call_operand.vmem [shape: f32[16,128], index: 9, kind: output, shape index: {}]
  %s10 = sld [smem:[#allocation0]]
  $region50: #{styletts2_forward.1} parent=0
    _
  %s12 = ssub.s32 1, %s10
  %s13 = scalar_select 0, %s12, %s10
  $region1: #{styletts2_forward.1} parent=0
    #allocation2 [shape = 'u8[32768]{0}', space=vmem, size = 0x8000, scoped, tag = 'input window, operand 8, single buffered']
    #allocation3 [shape = 's32[1]{0}', space=sflag, size = 0x4, scoped, tag = 'scoped memory for styletts2_forward.1']
    %14 = vsyncpa [#allocation3], 0
    // Predicated region
    $region2: #{styletts2_forward.1} parent=1 // pred_check
      _
    $region3: #{styletts2_forward.1} parent=1 // pred_check_branch
      %16 = sbr.rel (0) target = $region5
    $region4: #{styletts2_forward.1} parent=1 // pred_region
      _
    $region5: #{styletts2_forward.1} parent=1 // pred_fallthru
      _
    // Predicated region
    $region6: #{styletts2_forward.1} parent=1 // pred_check
      _
    $region7: #{styletts2_forward.1} parent=1 // pred_check_branch
      %18 = sbr.rel (0) target = $region9
    $region8: #{styletts2_forward.1} parent=1 // pred_region
      _
    $region9: #{styletts2_forward.1} parent=1 // pred_fallthru
      _
    // Predicated region
    $region10: #{styletts2_forward.1} parent=1 // pred_check
      _
    $region11: #{styletts2_forward.1} parent=1 // pred_check_branch
      %20 = sbr.rel (0) target = $region13
    $region12: #{styletts2_forward.1} parent=1 // pred_region
      _
    $region13: #{styletts2_forward.1} parent=1 // pred_fallthru
      _
    // Predicated region
    $region14: #{styletts2_forward.1} parent=1 // pred_check
      _
    $region15: #{styletts2_forward.1} parent=1 // pred_check_branch
      %22 = sbr.rel (0) target = $region17
    $region16: #{styletts2_forward.1} parent=1 // pred_region
      _
    $region17: #{styletts2_forward.1} parent=1 // pred_fallthru
      _
    // Predicated region
    $region18: #{styletts2_forward.1} parent=1 // pred_check
      _
    $region19: #{styletts2_forward.1} parent=1 // pred_check_branch
      %24 = sbr.rel (0) target = $region21
    $region20: #{styletts2_forward.1} parent=1 // pred_region
      _
    $region21: #{styletts2_forward.1} parent=1 // pred_fallthru
      _
    // Predicated region
    $region22: #{styletts2_forward.1} parent=1 // pred_check
      _
    $region23: #{styletts2_forward.1} parent=1 // pred_check_branch
      %26 = sbr.rel (0) target = $region25
    $region24: #{styletts2_forward.1} parent=1 // pred_region
      _
    $region25: #{styletts2_forward.1} parent=1 // pred_fallthru
      _
    // Predicated region
    $region26: #{styletts2_forward.1} parent=1 // pred_check
      _
    $region27: #{styletts2_forward.1} parent=1 // pred_check_branch
      %28 = sbr.rel (0) target = $region29
    $region28: #{styletts2_forward.1} parent=1 // pred_region
      _
    $region29: #{styletts2_forward.1} parent=1 // pred_fallthru
      _
    // Predicated region
    $region30: #{styletts2_forward.1} parent=1 // pred_check
      _
    $region31: #{styletts2_forward.1} parent=1 // pred_check_branch
      %30 = sbr.rel (0) target = $region33
    $region32: #{styletts2_forward.1} parent=1 // pred_region
      _
    $region33: #{styletts2_forward.1} parent=1 // pred_fallthru
      _
    // Predicated region
    $region34: #{styletts2_forward.1} parent=1 // pred_check
      _
    $region35: #{styletts2_forward.1} parent=1 // pred_check_branch
      %32 = sbr.rel (0) target = $region37
    $region36: #{styletts2_forward.1} parent=1 // pred_region
      %s34 = ssub.s32 1024, 1024
      %35 = vsyncadd [#allocation3], %s34
      %s36 = sshll.u32 [#allocation2], 4
      %s37 = int_to_ptr.vmem [resolvable:$true] %s36
      %42 = dma.hbm_to_vmem [thread:$0]  %s8, 1024, %s37, [#allocation3], 64, 64, 4
    $region37: #{styletts2_forward.1} parent=1 // pred_fallthru
      _
    // Predicated region
    $region38: #{styletts2_forward.1} parent=1 // pred_check
      _
    $region39: #{styletts2_forward.1} parent=1 // pred_check_branch
      %44 = sbr.rel (0) target = $region41
    $region40: #{styletts2_forward.1} parent=1 // pred_region
      %45 = dma.done [#allocation3], 1024
    $region41: #{styletts2_forward.1} parent=1 // pred_fallthru
      _
    %v47 = vld [vmem:[%s0] sm:$0xff]
    %v48 = vld [vmem:[%s0 + $0x8] sm:$0xff]
    %v49 = vlaneseq
    %v50 = vand.u32 %v49, 127
    %51 = vset.pattern.permute.xlu0 0
    %52 = vperm.xlu0 %51, %v47
    %v53 = vpop.permute.xlu0 %52
    %54 = vset.pattern.permute.xlu0 0
    %55 = vperm.xlu0 %54, %v48
    %v56 = vpop.permute.xlu0 %55
    %vm57 = vcmp.eq.s32.totalorder %v53, %v50
    %vm58 = vcmp.eq.s32.totalorder %v56, %v50
    %v59 = vsel %vm57, 1, 0
    %v60 = vsel %vm58, 1, 0
    %v61 = vcvt.s32.f32 %v59
    %v62 = vcvt.s32.f32 %v60
    %v63 = vpack.c.bf16 %v62, %v61
    %v64 = vld [vmem:[%s4] sm:$0xf]
    %v65 = vld [vmem:[%s4 + $0x4] sm:$0xf]
    %v66 = vld [vmem:[%s4 + $0x8] sm:$0xf]
    %v67 = vld [vmem:[%s4 + $0xc] sm:$0xf]
    %v68 = vld [vmem:[%s4 + $0x10] sm:$0xf]
    %v69 = vld [vmem:[%s4 + $0x14] sm:$0xf]
    %v70 = vld [vmem:[%s4 + $0x18] sm:$0xf]
    %v71 = vld [vmem:[%s4 + $0x1c] sm:$0xf]
    %v72 = vld [vmem:[%s4 + $0x20] sm:$0xf]
    %v73 = vld [vmem:[%s4 + $0x24] sm:$0xf]
    %v74 = vld [vmem:[%s4 + $0x28] sm:$0xf]
    %v75 = vld [vmem:[%s4 + $0x2c] sm:$0xf]
    %v76 = vld [vmem:[%s4 + $0x30] sm:$0xf]
    %v77 = vld [vmem:[%s4 + $0x34] sm:$0xf]
    %v78 = vld [vmem:[%s4 + $0x38] sm:$0xf]
    %v79 = vld [vmem:[%s4 + $0x3c] sm:$0xf]
    %v80 = vld [vmem:[%s1] sm:$0xf]
    %v81 = vld [vmem:[%s1 + $0x4] sm:$0xf]
    %v82 = vld [vmem:[%s5] sm:$0xf]
    %v83 = vld [vmem:[%s5 + $0x4] sm:$0xf]
    %v84 = vld [vmem:[%s5 + $0x8] sm:$0xf]
    %v85 = vld [vmem:[%s5 + $0xc] sm:$0xf]
    %v86 = vld [vmem:[%s5 + $0x10] sm:$0xf]
    %v87 = vld [vmem:[%s5 + $0x14] sm:$0xf]
    %v88 = vld [vmem:[%s5 + $0x18] sm:$0xf]
    %v89 = vld [vmem:[%s5 + $0x1c] sm:$0xf]
    %v90 = vld [vmem:[%s5 + $0x20] sm:$0xf]
    %v91 = vld [vmem:[%s5 + $0x24] sm:$0xf]
    %v92 = vld [vmem:[%s5 + $0x28] sm:$0xf]
    %v93 = vld [vmem:[%s5 + $0x2c] sm:$0xf]
    %v94 = vld [vmem:[%s5 + $0x30] sm:$0xf]
    %v95 = vld [vmem:[%s5 + $0x34] sm:$0xf]
    %v96 = vld [vmem:[%s5 + $0x38] sm:$0xf]
    %v97 = vld [vmem:[%s5 + $0x3c] sm:$0xf]
    %v100 = vunpack.c.l.b16 %v80
    %v101 = vunpack.c.l.b16 %v81
    %v102 = vpack.c.b16 %v101, %v100
    %v120 = vunpack.c.l.b16 %v82
    %v121 = vunpack.c.l.b16 %v83
    %v122 = vunpack.c.l.b16 %v84
    %v123 = vunpack.c.l.b16 %v85
    %v124 = vunpack.c.l.b16 %v86
    %v125 = vunpack.c.l.b16 %v87
    %v126 = vunpack.c.l.b16 %v88
    %v127 = vunpack.c.l.b16 %v89
    %v128 = vunpack.c.l.b16 %v90
    %v129 = vunpack.c.l.b16 %v91
    %v130 = vunpack.c.l.b16 %v92
    %v131 = vunpack.c.l.b16 %v93
    %v132 = vunpack.c.l.b16 %v94
    %v133 = vunpack.c.l.b16 %v95
    %v134 = vunpack.c.l.b16 %v96
    %v135 = vunpack.c.l.b16 %v97
    %v136 = vpack.c.b16 %v121, %v120
    %v137 = vpack.c.b16 %v123, %v122
    %v138 = vpack.c.b16 %v125, %v124
    %v139 = vpack.c.b16 %v127, %v126
    %v140 = vpack.c.b16 %v129, %v128
    %v141 = vpack.c.b16 %v131, %v130
    %v142 = vpack.c.b16 %v133, %v132
    %v143 = vpack.c.b16 %v135, %v134
    %152 = vmatprep.subr.bf16.mxu0 0
    %153 = vmatpush1.bf16.msra.mxu0 %v136
    %154 = vmatprep.subr.bf16.mxu0 0
    %155 = vmatpush1.bf16.msra.mxu0 %v137
    %156 = vmatprep.subr.bf16.mxu0 0
    %157 = vmatpush1.bf16.msra.mxu0 %v138
    %158 = vmatprep.subr.bf16.mxu0 0
    %159 = vmatpush1.bf16.msra.mxu0 %v139
    %160 = vmatprep.subr.bf16.mxu0 0
    %161 = vmatpush1.bf16.msra.mxu0 %v140
    %162 = vmatprep.subr.bf16.mxu0 0
    %163 = vmatpush1.bf16.msra.mxu0 %v141
    %164 = vmatprep.subr.bf16.mxu0 0
    %165 = vmatpush1.bf16.msra.mxu0 %v142
    %166 = vmatprep.subr.bf16.mxu0 0
    %167 = vmatpush1.bf16.msra.mxu0 %v143
    %168 = vmatprep.subr.bf16.mxu0 0
    %169 = vmatpush1.bf16.msra.mxu0 0
    %170 = vmatprep.subr.bf16.mxu0 0
    %171 = vmatpush1.bf16.msra.mxu0 0
    %172 = vmatprep.subr.bf16.mxu0 0
    %173 = vmatpush1.bf16.msra.mxu0 0
    %174 = vmatprep.subr.bf16.mxu0 0
    %175 = vmatpush1.bf16.msra.mxu0 0
    %176 = vmatprep.subr.bf16.mxu0 0
    %177 = vmatpush1.bf16.msra.mxu0 0
    %178 = vmatprep.subr.bf16.mxu0 0
    %179 = vmatpush1.bf16.msra.mxu0 0
    %180 = vmatprep.subr.bf16.mxu0 0
    %181 = vmatpush1.bf16.msra.mxu0 0
    %182 = vmatprep.subr.bf16.mxu0 0
    %183 = vmatpush1.bf16.msra.mxu0 0
    %184 = vmatprep.mubr.bf16.mxu0 0
    %185 = vmatmul.mubr.bf16.gmra.mrb[0].mxu0 %v102
    %v186 = vpop.f32.mrb[0].mxu0
    %v187 = vadd.f32 0.0, %v186
    %v188 = vpop.f32.mrb[0].mxu0
    %v189 = vpop.f32.mrb[0].mxu0
    %v190 = vadd.f32 0.0, %v189
    %v191 = vpop.f32.mrb[0].mxu0
    %192 = vdwg.mxu0
    %v209 = vunpack.c.l.b16 %v64
    %v210 = vunpack.c.l.b16 %v65
    %v211 = vunpack.c.l.b16 %v66
    %v212 = vunpack.c.l.b16 %v67
    %v213 = vunpack.c.l.b16 %v68
    %v214 = vunpack.c.l.b16 %v69
    %v215 = vunpack.c.l.b16 %v70
    %v216 = vunpack.c.l.b16 %v71
    %v217 = vunpack.c.l.b16 %v72
    %v218 = vunpack.c.l.b16 %v73
    %v219 = vunpack.c.l.b16 %v74
    %v220 = vunpack.c.l.b16 %v75
    %v221 = vunpack.c.l.b16 %v76
    %v222 = vunpack.c.l.b16 %v77
    %v223 = vunpack.c.l.b16 %v78
    %v224 = vunpack.c.l.b16 %v79
    %v225 = vpack.c.b16 %v210, %v209
    %v226 = vpack.c.b16 %v212, %v211
    %v227 = vpack.c.b16 %v214, %v213
    %v228 = vpack.c.b16 %v216, %v215
    %v229 = vpack.c.b16 %v218, %v217
    %v230 = vpack.c.b16 %v220, %v219
    %v231 = vpack.c.b16 %v222, %v221
    %v232 = vpack.c.b16 %v224, %v223
    %241 = vmatprep.subr.bf16.mxu0 0
    %242 = vmatpush1.bf16.msra.mxu0 %v225
    %243 = vmatprep.subr.bf16.mxu0 0
    %244 = vmatpush1.bf16.msra.mxu0 %v226
    %245 = vmatprep.subr.bf16.mxu0 0
    %246 = vmatpush1.bf16.msra.mxu0 %v227
    %247 = vmatprep.subr.bf16.mxu0 0
    %248 = vmatpush1.bf16.msra.mxu0 %v228
    %249 = vmatprep.subr.bf16.mxu0 0
    %250 = vmatpush1.bf16.msra.mxu0 %v229
    %251 = vmatprep.subr.bf16.mxu0 0
    %252 = vmatpush1.bf16.msra.mxu0 %v230
    %253 = vmatprep.subr.bf16.mxu0 0
    %254 = vmatpush1.bf16.msra.mxu0 %v231
    %255 = vmatprep.subr.bf16.mxu0 0
    %256 = vmatpush1.bf16.msra.mxu0 %v232
    %257 = vmatprep.subr.bf16.mxu0 0
    %258 = vmatpush1.bf16.msra.mxu0 0
    %259 = vmatprep.subr.bf16.mxu0 0
    %260 = vmatpush1.bf16.msra.mxu0 0
    %261 = vmatprep.subr.bf16.mxu0 0
    %262 = vmatpush1.bf16.msra.mxu0 0
    %263 = vmatprep.subr.bf16.mxu0 0
    %264 = vmatpush1.bf16.msra.mxu0 0
    %265 = vmatprep.subr.bf16.mxu0 0
    %266 = vmatpush1.bf16.msra.mxu0 0
    %267 = vmatprep.subr.bf16.mxu0 0
    %268 = vmatpush1.bf16.msra.mxu0 0
    %269 = vmatprep.subr.bf16.mxu0 0
    %270 = vmatpush1.bf16.msra.mxu0 0
    %271 = vmatprep.subr.bf16.mxu0 0
    %272 = vmatpush1.bf16.msra.mxu0 0
    %273 = vmatprep.mubr.bf16.mxu0 0
    %274 = vmatmul.mubr.bf16.gmra.mrb[0].mxu0 %v63
    %v275 = vpop.f32.mrb[0].mxu0
    %v276 = vadd.f32 %v187, %v275
    %v277 = vpop.f32.mrb[0].mxu0
    %v278 = vpop.f32.mrb[0].mxu0
    %v279 = vadd.f32 %v190, %v278
    %v280 = vpop.f32.mrb[0].mxu0
    %281 = vdwg.mxu0
    %v282 = vld [vmem:[%s3] sm:$0x1]
    %v284 = vlaneseq
    %v285 = vshrl.u32 %v284, 7
    %v286 = vsub.s32 0, %v285
    %v287 = vrot.slane %v282, %v286
    %v289 = vadd.f32 %v276, %v287
    %v290 = vadd.f32 %v279, %v287
    %v291 = vtanh.pop %v289
    %v292 = vtanh.pop %v290
    %v293 = vld [vmem:[%s2] sm:$0xf]
    %v294 = vld [vmem:[%s2 + $0x4] sm:$0xf]
    %v295 = vunpack.c.l.bf16 %v293
    %v296 = vunpack.c.l.bf16 %v294
    %v297 = vadd.f32 %v291, %v295
    %v298 = vadd.f32 %v292, %v296
    %v299 = vpack.c.bf16 %v298, %v297
    %v300 = vld [vmem:[%s6] sm:$0xf]
    %v301 = vld [vmem:[%s6 + $0x4] sm:$0xf]
    %v302 = vld [vmem:[%s6 + $0x8] sm:$0xf]
    %v303 = vld [vmem:[%s6 + $0xc] sm:$0xf]
    %v304 = vld [vmem:[%s6 + $0x10] sm:$0xf]
    %v305 = vld [vmem:[%s6 + $0x14] sm:$0xf]
    %v306 = vld [vmem:[%s6 + $0x18] sm:$0xf]
    %v307 = vld [vmem:[%s6 + $0x1c] sm:$0xf]
    %v308 = vld [vmem:[%s6 + $0x20] sm:$0xf]
    %v309 = vld [vmem:[%s6 + $0x24] sm:$0xf]
    %v310 = vld [vmem:[%s6 + $0x28] sm:$0xf]
    %v311 = vld [vmem:[%s6 + $0x2c] sm:$0xf]
    %v312 = vld [vmem:[%s6 + $0x30] sm:$0xf]
    %v313 = vld [vmem:[%s6 + $0x34] sm:$0xf]
    %v314 = vld [vmem:[%s6 + $0x38] sm:$0xf]
    %v315 = vld [vmem:[%s6 + $0x3c] sm:$0xf]
    %v316 = vld [vmem:[%s7] sm:$0x1]
    %v318 = vlaneseq
    %v319 = vshrl.u32 %v318, 7
    %v320 = vsub.s32 0, %v319
    %v321 = vrot.slane %v316, %v320
    %v339 = vunpack.c.l.b16 %v300
    %v340 = vunpack.c.l.b16 %v301
    %v341 = vunpack.c.l.b16 %v302
    %v342 = vunpack.c.l.b16 %v303
    %v343 = vunpack.c.l.b16 %v304
    %v344 = vunpack.c.l.b16 %v305
    %v345 = vunpack.c.l.b16 %v306
    %v346 = vunpack.c.l.b16 %v307
    %v347 = vunpack.c.l.b16 %v308
    %v348 = vunpack.c.l.b16 %v309
    %v349 = vunpack.c.l.b16 %v310
    %v350 = vunpack.c.l.b16 %v311
    %v351 = vunpack.c.l.b16 %v312
    %v352 = vunpack.c.l.b16 %v313
    %v353 = vunpack.c.l.b16 %v314
    %v354 = vunpack.c.l.b16 %v315
    %v355 = vpack.c.b16 %v340, %v339
    %v356 = vpack.c.b16 %v342, %v341
    %v357 = vpack.c.b16 %v344, %v343
    %v358 = vpack.c.b16 %v346, %v345
    %v359 = vpack.c.b16 %v348, %v347
    %v360 = vpack.c.b16 %v350, %v349
    %v361 = vpack.c.b16 %v352, %v351
    %v362 = vpack.c.b16 %v354, %v353
    %371 = vmatprep.subr.bf16.mxu0 0
    %372 = vmatpush1.bf16.msra.mxu0 %v355
    %373 = vmatprep.subr.bf16.mxu0 0
    %374 = vmatpush1.bf16.msra.mxu0 %v356
    %375 = vmatprep.subr.bf16.mxu0 0
    %376 = vmatpush1.bf16.msra.mxu0 %v357
    %377 = vmatprep.subr.bf16.mxu0 0
    %378 = vmatpush1.bf16.msra.mxu0 %v358
    %379 = vmatprep.subr.bf16.mxu0 0
    %380 = vmatpush1.bf16.msra.mxu0 %v359
    %381 = vmatprep.subr.bf16.mxu0 0
    %382 = vmatpush1.bf16.msra.mxu0 %v360
    %383 = vmatprep.subr.bf16.mxu0 0
    %384 = vmatpush1.bf16.msra.mxu0 %v361
    %385 = vmatprep.subr.bf16.mxu0 0
    %386 = vmatpush1.bf16.msra.mxu0 %v362
    %387 = vmatprep.subr.bf16.mxu0 0
    %388 = vmatpush1.bf16.msra.mxu0 0
    %389 = vmatprep.subr.bf16.mxu0 0
    %390 = vmatpush1.bf16.msra.mxu0 0
    %391 = vmatprep.subr.bf16.mxu0 0
    %392 = vmatpush1.bf16.msra.mxu0 0
    %393 = vmatprep.subr.bf16.mxu0 0
    %394 = vmatpush1.bf16.msra.mxu0 0
    %395 = vmatprep.subr.bf16.mxu0 0
    %396 = vmatpush1.bf16.msra.mxu0 0
    %397 = vmatprep.subr.bf16.mxu0 0
    %398 = vmatpush1.bf16.msra.mxu0 0
    %399 = vmatprep.subr.bf16.mxu0 0
    %400 = vmatpush1.bf16.msra.mxu0 0
    %401 = vmatprep.subr.bf16.mxu0 0
    %402 = vmatpush1.bf16.msra.mxu0 0
    %403 = vmatprep.mubr.bf16.mxu0 0
    %404 = vmatmul.mubr.bf16.gmra.mrb[0].mxu0 %v299
    %v405 = vpop.f32.mrb[0].mxu0
    %v406 = vadd.f32 %v321, %v405
    %v407 = vpop.f32.mrb[0].mxu0
    %v408 = vpop.f32.mrb[0].mxu0
    %v409 = vadd.f32 %v321, %v408
    %v410 = vpop.f32.mrb[0].mxu0
    %411 = vdwg.mxu0
    %v412 = vtanh.pop %v406
    %v413 = vtanh.pop %v409
    %v414 = vmul.f32 %v412, 0.1
    %v415 = vmul.f32 %v413, 0.1
    %v416 = vadd.f32 %v291, %v414
    %v417 = vadd.f32 %v292, %v415
    %v418 = vpack.c.bf16 %v417, %v416
    %v419 = vld [vmem:[#allocation2] sm:$0xf]
    %v420 = vld [vmem:[#allocation2 + $0x4] sm:$0xf]
    %v421 = vld [vmem:[#allocation2 + $0x8] sm:$0xf]
    %v422 = vld [vmem:[#allocation2 + $0xc] sm:$0xf]
    %v423 = vld [vmem:[#allocation2 + $0x10] sm:$0xf]
    %v424 = vld [vmem:[#allocation2 + $0x14] sm:$0xf]
    %v425 = vld [vmem:[#allocation2 + $0x18] sm:$0xf]
    %v426 = vld [vmem:[#allocation2 + $0x1c] sm:$0xf]
    %v427 = vld [vmem:[#allocation2 + $0x20] sm:$0xf]
    %v428 = vld [vmem:[#allocation2 + $0x24] sm:$0xf]
    %v429 = vld [vmem:[#allocation2 + $0x28] sm:$0xf]
    %v430 = vld [vmem:[#allocation2 + $0x2c] sm:$0xf]
    %v431 = vld [vmem:[#allocation2 + $0x30] sm:$0xf]
    %v432 = vld [vmem:[#allocation2 + $0x34] sm:$0xf]
    %v433 = vld [vmem:[#allocation2 + $0x38] sm:$0xf]
    %v434 = vld [vmem:[#allocation2 + $0x3c] sm:$0xf]
    %v451 = vunpack.c.l.b16 %v419
    %v452 = vunpack.c.l.b16 %v420
    %v453 = vunpack.c.l.b16 %v421
    %v454 = vunpack.c.l.b16 %v422
    %v455 = vunpack.c.l.b16 %v423
    %v456 = vunpack.c.l.b16 %v424
    %v457 = vunpack.c.l.b16 %v425
    %v458 = vunpack.c.l.b16 %v426
    %v459 = vunpack.c.l.b16 %v427
    %v460 = vunpack.c.l.b16 %v428
    %v461 = vunpack.c.l.b16 %v429
    %v462 = vunpack.c.l.b16 %v430
    %v463 = vunpack.c.l.b16 %v431
    %v464 = vunpack.c.l.b16 %v432
    %v465 = vunpack.c.l.b16 %v433
    %v466 = vunpack.c.l.b16 %v434
    %v467 = vpack.c.b16 %v452, %v451
    %v468 = vpack.c.b16 %v454, %v453
    %v469 = vpack.c.b16 %v456, %v455
    %v470 = vpack.c.b16 %v458, %v457
    %v471 = vpack.c.b16 %v460, %v459
    %v472 = vpack.c.b16 %v462, %v461
    %v473 = vpack.c.b16 %v464, %v463
    %v474 = vpack.c.b16 %v466, %v465
    %483 = vmatprep.subr.bf16.mxu0 0
    %484 = vmatpush1.bf16.msra.mxu0 %v467
    %485 = vmatprep.subr.bf16.mxu0 0
    %486 = vmatpush1.bf16.msra.mxu0 %v468
    %487 = vmatprep.subr.bf16.mxu0 0
    %488 = vmatpush1.bf16.msra.mxu0 %v469
    %489 = vmatprep.subr.bf16.mxu0 0
    %490 = vmatpush1.bf16.msra.mxu0 %v470
    %491 = vmatprep.subr.bf16.mxu0 0
    %492 = vmatpush1.bf16.msra.mxu0 %v471
    %493 = vmatprep.subr.bf16.mxu0 0
    %494 = vmatpush1.bf16.msra.mxu0 %v472
    %495 = vmatprep.subr.bf16.mxu0 0
    %496 = vmatpush1.bf16.msra.mxu0 %v473
    %497 = vmatprep.subr.bf16.mxu0 0
    %498 = vmatpush1.bf16.msra.mxu0 %v474
    %499 = vmatprep.subr.bf16.mxu0 0
    %500 = vmatpush1.bf16.msra.mxu0 0
    %501 = vmatprep.subr.bf16.mxu0 0
    %502 = vmatpush1.bf16.msra.mxu0 0
    %503 = vmatprep.subr.bf16.mxu0 0
    %504 = vmatpush1.bf16.msra.mxu0 0
    %505 = vmatprep.subr.bf16.mxu0 0
    %506 = vmatpush1.bf16.msra.mxu0 0
    %507 = vmatprep.subr.bf16.mxu0 0
    %508 = vmatpush1.bf16.msra.mxu0 0
    %509 = vmatprep.subr.bf16.mxu0 0
    %510 = vmatpush1.bf16.msra.mxu0 0
    %511 = vmatprep.subr.bf16.mxu0 0
    %512 = vmatpush1.bf16.msra.mxu0 0
    %513 = vmatprep.subr.bf16.mxu0 0
    %514 = vmatpush1.bf16.msra.mxu0 0
    %515 = vmatprep.mubr.bf16.mxu0 0
    %516 = vmatmul.mubr.bf16.gmra.mrb[0].mxu0 %v418
    %v517 = vpop.f32.mrb[0].mxu0
    %v518 = vadd.f32 0.0, %v517
    %v519 = vpop.f32.mrb[0].mxu0
    %v520 = vpop.f32.mrb[0].mxu0
    %v521 = vadd.f32 0.0, %v520
    %v522 = vpop.f32.mrb[0].mxu0
    %523 = vdwg.mxu0
    %v524 = vtanh.pop %v518
    %v525 = vtanh.pop %v521
    %526 = vst [vmem:[%s9] sm:$0xff] %v524
    %527 = vst [vmem:[%s9 + $0x8] sm:$0xff] %v525
    // Predicated region
    $region42: #{styletts2_forward.1} parent=1 // pred_check
      _
    $region43: #{styletts2_forward.1} parent=1 // pred_check_branch
      %529 = sbr.rel (0) target = $region45
    $region44: #{styletts2_forward.1} parent=1 // pred_region
      _
    $region45: #{styletts2_forward.1} parent=1 // pred_fallthru
      _
    // Predicated region
    $region46: #{styletts2_forward.1} parent=1 // pred_check
      _
    $region47: #{styletts2_forward.1} parent=1 // pred_check_branch
      %531 = sbr.rel (0) target = $region49
    $region48: #{styletts2_forward.1} parent=1 // pred_region
      _
    $region49: #{styletts2_forward.1} parent=1 // pred_fallthru
      _
    %532 = vsyncpa [#allocation3], 1

</llo_original>
